<compile_context>
chip_gen: v7x
topology: tpu7x:2x2x1
jax: 0.10.0
libtpu: 0.0.40
codegen_flags: <defaults>
</compile_context>

<pallas_src>
import functools

import jax
import jax.numpy as jnp
from jax.experimental import pallas as pl
from jax.experimental.pallas import tpu as pltpu


def _round_up(x, m):
    return ((x + m - 1) // m) * m


def _chamfer_kernel(x_ref, yt_ref, xh_ref, yh_ref, rowmin_ref, colmin_ref, row_acc):
    jt = pl.program_id(2)

    x = x_ref[0]          # (TI, D)   gts rows for this i-tile (bf16 or f32)
    yt = yt_ref[0]        # (D, TJ)   preds (transposed) for this j-tile
    xh = xh_ref[0]        # (TI, 1)   0.5 * ||gts_i||^2   (f32)
    yh = yh_ref[0]        # (1, TJ)   0.5 * ||preds_j||^2 (f32)

    # Cross term on the MXU; everything else is in "half distance" units:
    #   p[i, j] = 0.5 * ||x_i - y_j||^2
    zz = jnp.dot(x, yt, preferred_element_type=jnp.float32)    # (TI, TJ) f32
    p = xh + (yh - zz)

    # ---- loss1 partials: min over this i-tile's rows (sublane reduce), lane-dense. ----
    colmin_ref[...] = jnp.min(p, axis=0, keepdims=True).reshape(colmin_ref.shape)

    # ---- loss2: fold the TJ lanes down to 128 with a static min tree (pure VPU,
    #      vreg-aligned 128-wide lane slices), then one min into the small accumulator.
    tj = p.shape[1]                                   # static
    blocks = [p[:, k * 128:(k + 1) * 128] for k in range(tj // 128)]
    while len(blocks) > 1:
        nxt = [jnp.minimum(blocks[k], blocks[k + 1])
               for k in range(0, len(blocks) - 1, 2)]
        if len(blocks) % 2:
            nxt.append(blocks[-1])
        blocks = nxt
    folded = blocks[0]                                # (TI, 128) f32

    @pl.when(jt == 0)
    def _():
        row_acc[...] = folded

    @pl.when(jt > 0)
    def _():
        row_acc[...] = jnp.minimum(row_acc[...], folded)

    # One cross-lane (XLU) reduce + one small masked store per i-tile, at the last j-tile.
    @pl.when(jt == pl.num_programs(2) - 1)
    def _():
        rmin = jnp.min(row_acc[...], axis=1, keepdims=True)    # (TI, 1)
        rowmin_ref[...] = rmin.reshape(rowmin_ref.shape)


@functools.partial(jax.jit, static_argnames=("tile_i", "tile_j", "compute_dtype"))
def chamfer_distance(preds, gts, *, tile_i=512, tile_j=4096,
                     compute_dtype=jnp.bfloat16):
    """preds: [B, N1, D], gts: [B, N2, D] -> per-batch Chamfer loss [B] (float32)."""
    B, N1, D = preds.shape
    B2, N2, D2 = gts.shape
    assert B == B2 and D == D2

    TI = min(_round_up(tile_i, 8), _round_up(N2, 8))
    TJ = min(_round_up(tile_j, 128), _round_up(N1, 128))
    # v7x megacore: with B == 1 make sure the i axis has >= 2 tiles (when the cloud is
    # large enough) so both TensorCores get work; j is the reduction axis and can't split.
    if B == 1:
        TI = min(TI, max(8, _round_up((N2 + 1) // 2, 8)))

    N2p = _round_up(N2, TI)
    N1p = _round_up(N1, TJ)
    num_i = N2p // TI
    num_j = N1p // TJ

    # Round the points ONCE to the MXU compute dtype; squared norms are taken from the
    # rounded points so the kernel computes the exact Chamfer distance of the rounded
    # clouds (no catastrophic cancellation for near-duplicate points).
    gts_c = gts.astype(compute_dtype)
    preds_c = preds.astype(compute_dtype)

    # Pad the point axes by replicating the last point: duplicates never change a min,
    # and the padded rows / columns are sliced off before the means.
    gts_p = jnp.pad(gts_c, ((0, 0), (0, N2p - N2), (0, 0)), mode="edge")
    preds_p = jnp.pad(preds_c, ((0, 0), (0, N1p - N1), (0, 0)), mode="edge")

    x = gts_p                                     # [B, N2p, D]   LHS rows
    yt = jnp.transpose(preds_p, (0, 2, 1))        # [B, D, N1p]   lane-dense RHS
    gf = gts_p.astype(jnp.float32)
    pf = preds_p.astype(jnp.float32)
    xh = 0.5 * jnp.sum(gf * gf, axis=-1, keepdims=True)   # [B, N2p, 1]
    yh = 0.5 * jnp.sum(pf * pf, axis=-1)[:, None, :]      # [B, 1, N1p]

    itemsize = jnp.dtype(compute_dtype).itemsize
    flops = int(B) * int(N2p) * int(N1p) * (2 * int(D) + 5)
    bytes_accessed = int(
        B * N2p * D * itemsize                       # x
        + num_i * B * D * N1p * itemsize             # yt, re-streamed per i-tile
        + B * N2p * 4 + num_i * B * N1p * 4          # xh, yh
        + B * N2p * 4 + B * num_i * N1p * 4)         # rowmin / colmin outputs

    # VMEM budget: the (TI, TJ) f32 zz/p intermediates dominate; keep the ceiling under
    # v7x's 64 MiB physical VMEM (v5e/v6e have 128 MiB but small default scoped limits).
    tile_p_bytes = TI * TJ * 4
    vmem_limit = int(min(max(32 * 2**20, 5 * tile_p_bytes + (8 << 20)), 56 * 2**20))

    rowmin, colmin = pl.pallas_call(
        _chamfer_kernel,
        out_shape=(
            jax.ShapeDtypeStruct((B, N2p, 1), jnp.float32),          # min_j per row
            jax.ShapeDtypeStruct((B, num_i, 1, N1p), jnp.float32),   # per-i-tile min_i
        ),
        grid_spec=pltpu.PrefetchScalarGridSpec(
            num_scalar_prefetch=0,
            grid=(B, num_i, num_j),
            in_specs=[
                pl.BlockSpec((1, TI, D), lambda b, i, j: (b, i, 0)),   # gts rows
                pl.BlockSpec((1, D, TJ), lambda b, i, j: (b, 0, j)),   # preds^T cols
                pl.BlockSpec((1, TI, 1), lambda b, i, j: (b, i, 0)),   # 0.5*||gts||^2
                pl.BlockSpec((1, 1, TJ), lambda b, i, j: (b, 0, j)),   # 0.5*||preds||^2
            ],
            out_specs=(
                pl.BlockSpec((1, TI, 1), lambda b, i, j: (b, i, 0)),
                pl.BlockSpec((1, 1, 1, TJ), lambda b, i, j: (b, i, 0, j)),
            ),
            scratch_shapes=[pltpu.VMEM((TI, 128), jnp.float32)],       # running row min
        ),
        compiler_params=pltpu.CompilerParams(
            dimension_semantics=("parallel", "parallel", "arbitrary"),
            vmem_limit_bytes=vmem_limit),
        cost_estimate=pl.CostEstimate(
            flops=flops, transcendentals=0, bytes_accessed=bytes_accessed),
    )(x, yt, xh, yh)

    # Cheap O(N) finalize: drop padded rows/cols, fold the i-tile partials, take means.
    loss2_half = jnp.mean(rowmin[:, :N2, 0], axis=1)                     # mean_i min_j
    loss1_half = jnp.mean(jnp.min(colmin, axis=1)[:, 0, :N1], axis=1)    # mean_j min_i
    return loss1_half + loss2_half        # == (loss1 + loss2) / 2


def _chamfer_reference(preds, gts):
    # Pure-JAX reference mirroring the PyTorch module.
    x = gts.astype(jnp.float32)    # [B, N2, D]
    y = preds.astype(jnp.float32)  # [B, N1, D]
    xx = jnp.sum(x * x, axis=-1)[:, :, None]          # [B, N2, 1]
    yy = jnp.sum(y * y, axis=-1)[:, None, :]          # [B, 1, N1]
    zz = jnp.einsum("bid,bjd->bij", x, y)             # [B, N2, N1]
    P = xx + yy - 2.0 * zz
    loss1 = jnp.mean(jnp.min(P, axis=1), axis=1)
    loss2 = jnp.mean(jnp.min(P, axis=2), axis=1)
    return (loss1 + loss2) / 2.0


if __name__ == "__main__":
    key = jax.random.PRNGKey(0)
    k1, k2, k3, k4, k5, k6 = jax.random.split(key, 6)

    # Case 1: small shapes matching the PyTorch module's signature (D = 3), exact-f32
    # compute path -> tight check against the f32 reference.
    B, N1, N2, D = 2, 16, 8, 3
    preds = jax.random.normal(k1, (B, N1, D), dtype=jnp.float32)
    gts = jax.random.normal(k2, (B, N2, D), dtype=jnp.float32)
    out = jax.block_until_ready(
        chamfer_distance(preds, gts, compute_dtype=jnp.float32))
    ref = _chamfer_reference(preds, gts)
    assert out.shape == (B,)
    assert jnp.allclose(out, ref, atol=1e-5, rtol=1e-5), (out, ref)

    # Case 2: unaligned sizes with small tiles to exercise the multi-tile path
    # (edge padding, lane-block min fold, running j-tile min, per-i-tile partials),
    # default bf16 cross term.  The kernel computes the Chamfer distance of the
    # bf16-rounded clouds, so compare tightly against the reference on rounded inputs
    # and loosely against the full-f32 reference.
    B, N1, N2, D = 2, 300, 52, 3
    preds = jax.random.normal(k3, (B, N1, D), dtype=jnp.float32)
    gts = jax.random.normal(k4, (B, N2, D), dtype=jnp.float32)
    out = jax.block_until_ready(chamfer_distance(preds, gts, tile_i=16, tile_j=128))
    pr = preds.astype(jnp.bfloat16).astype(jnp.float32)
    gr = gts.astype(jnp.bfloat16).astype(jnp.float32)
    ref_rounded = _chamfer_reference(pr, gr)
    ref_f32 = _chamfer_reference(preds, gts)
    assert jnp.allclose(out, ref_rounded, atol=2e-4, rtol=2e-4), (out, ref_rounded)
    assert jnp.allclose(out, ref_f32, atol=5e-2, rtol=5e-2), (out, ref_f32)

    # Case 3: default (large) tiles with multiple i-tiles and padding, bf16 path.
    B, N1, N2, D = 2, 900, 600, 3
    preds = jax.random.normal(k5, (B, N1, D), dtype=jnp.float32)
    gts = jax.random.normal(k6, (B, N2, D), dtype=jnp.float32)
    out = jax.block_until_ready(chamfer_distance(preds, gts))
    pr = preds.astype(jnp.bfloat16).astype(jnp.float32)
    gr = gts.astype(jnp.bfloat16).astype(jnp.float32)
    ref_rounded = _chamfer_reference(pr, gr)
    assert jnp.allclose(out, ref_rounded, atol=2e-4, rtol=2e-4), (out, ref_rounded)

    print("KERNEL_OK")
</pallas_src>

<mosaic_0001>
module attributes {stable_mosaic.version = 11 : i64} {
  func.func @_chamfer_kernel(%arg0: i32, %arg1: i32, %arg2: i32, %arg3: memref<1x8x3xf32, #tpu.memory_space<vmem>>, %arg4: memref<1x3x128xf32, #tpu.memory_space<vmem>>, %arg5: memref<1x8x1xf32, #tpu.memory_space<vmem>>, %arg6: memref<1x1x128xf32, #tpu.memory_space<vmem>>, %arg7: memref<1x8x1xf32, #tpu.memory_space<vmem>>, %arg8: memref<1x1x1x128xf32, #tpu.memory_space<vmem>>, %arg9: memref<8x128xf32, #tpu.memory_space<vmem>>) attributes {dimension_semantics = [#tpu.dimension_semantics<parallel>, #tpu.dimension_semantics<parallel>, #tpu.dimension_semantics<arbitrary>], iteration_bounds = array<i64: 2, 1, 1>, scalar_prefetch = 0 : i64, scratch_operands = 1 : i64, tpu.core_type = #tpu.core_type<tc>, window_params = [{transform_indices = @transform_0, window_bounds = array<i64: 1, 8, 3>}, {transform_indices = @transform_1, window_bounds = array<i64: 1, 3, 128>}, {transform_indices = @transform_2, window_bounds = array<i64: 1, 8, 1>}, {transform_indices = @transform_3, window_bounds = array<i64: 1, 1, 128>}, {transform_indices = @transform_4, window_bounds = array<i64: 1, 8, 1>}, {transform_indices = @transform_5, window_bounds = array<i64: 1, 1, 1, 128>}]} {
    %c0 = arith.constant 0 : index
    %c0_0 = arith.constant 0 : index
    %c0_1 = arith.constant 0 : index
    %0 = vector.load %arg3[%c0, %c0_0, %c0_1] : memref<1x8x3xf32, #tpu.memory_space<vmem>>, vector<1x8x3xf32>
    %1 = vector.shape_cast %0 : vector<1x8x3xf32> to vector<8x3xf32>
    %c0_2 = arith.constant 0 : index
    %c0_3 = arith.constant 0 : index
    %c0_4 = arith.constant 0 : index
    %2 = vector.load %arg4[%c0_2, %c0_3, %c0_4] : memref<1x3x128xf32, #tpu.memory_space<vmem>>, vector<1x3x128xf32>
    %3 = vector.shape_cast %2 : vector<1x3x128xf32> to vector<3x128xf32>
    %c0_5 = arith.constant 0 : index
    %c0_6 = arith.constant 0 : index
    %c0_7 = arith.constant 0 : index
    %4 = vector.load %arg5[%c0_5, %c0_6, %c0_7] : memref<1x8x1xf32, #tpu.memory_space<vmem>>, vector<1x8x1xf32>
    %5 = vector.shape_cast %4 : vector<1x8x1xf32> to vector<8x1xf32>
    %c0_8 = arith.constant 0 : index
    %c0_9 = arith.constant 0 : index
    %c0_10 = arith.constant 0 : index
    %6 = vector.load %arg6[%c0_8, %c0_9, %c0_10] : memref<1x1x128xf32, #tpu.memory_space<vmem>>, vector<1x1x128xf32>
    %7 = vector.shape_cast %6 : vector<1x1x128xf32> to vector<1x128xf32>
    %cst = arith.constant dense<0.000000e+00> : vector<8x128xf32>
    %8 = tpu.matmul %1, %3, %cst {dimension_numbers = #tpu.dot_dimension_numbers<[1], [0], [0], [1], [0, 0, 1, 1], [], []>} : vector<8x3xf32>, vector<3x128xf32>, vector<8x128xf32> -> vector<8x128xf32>
    %9 = vector.broadcast %7 : vector<1x128xf32> to vector<8x128xf32>
    %10 = arith.subf %9, %8 : vector<8x128xf32>
    %11 = vector.broadcast %5 : vector<8x1xf32> to vector<8x128xf32>
    %12 = arith.addf %11, %10 : vector<8x128xf32>
    %cst_11 = arith.constant dense<0x7F800000> : vector<128xf32>
    %13 = vector.multi_reduction <minimumf>, %12, %cst_11 [0] : vector<8x128xf32> to vector<128xf32>
    %14 = vector.shape_cast %13 : vector<128xf32> to vector<1x128xf32>
    %15 = vector.shape_cast %14 : vector<1x128xf32> to vector<1x1x1x128xf32>
    %c0_12 = arith.constant 0 : index
    %c0_13 = arith.constant 0 : index
    %c0_14 = arith.constant 0 : index
    %c0_15 = arith.constant 0 : index
    %16 = vector.load %arg8[%c0_12, %c0_13, %c0_14, %c0_15] : memref<1x1x1x128xf32, #tpu.memory_space<vmem>>, vector<1x1x1x128xf32>
    tpu.vector_store %arg8[%c0_12, %c0_13, %c0_14, %c0_15], %15 {strides = array<i32>} : memref<1x1x1x128xf32, #tpu.memory_space<vmem>>, vector<1x1x1x128xf32>,
    %c0_i32 = arith.constant 0 : i32
    %17 = arith.cmpi eq, %arg2, %c0_i32 : i32
    %18 = arith.extui %17 : i1 to i32
    %c0_i32_16 = arith.constant 0 : i32
    %19 = arith.cmpi ne, %18, %c0_i32_16 : i32
    scf.if %19 {
      %c0_21 = arith.constant 0 : index
      %c0_22 = arith.constant 0 : index
      %26 = vector.load %arg9[%c0_21, %c0_22] : memref<8x128xf32, #tpu.memory_space<vmem>>, vector<8x128xf32>
      tpu.vector_store %arg9[%c0_21, %c0_22], %12 {strides = array<i32>} : memref<8x128xf32, #tpu.memory_space<vmem>>, vector<8x128xf32>,
    } else {
    }
    %c0_i32_17 = arith.constant 0 : i32
    %20 = arith.cmpi sgt, %arg2, %c0_i32_17 : i32
    %21 = arith.extui %20 : i1 to i32
    %c0_i32_18 = arith.constant 0 : i32
    %22 = arith.cmpi ne, %21, %c0_i32_18 : i32
    scf.if %22 {
      %c0_21 = arith.constant 0 : index
      %c0_22 = arith.constant 0 : index
      %26 = vector.load %arg9[%c0_21, %c0_22] : memref<8x128xf32, #tpu.memory_space<vmem>>, vector<8x128xf32>
      %27 = arith.minimumf %26, %12 : vector<8x128xf32>
      %c0_23 = arith.constant 0 : index
      %c0_24 = arith.constant 0 : index
      %28 = vector.load %arg9[%c0_23, %c0_24] : memref<8x128xf32, #tpu.memory_space<vmem>>, vector<8x128xf32>
      tpu.vector_store %arg9[%c0_23, %c0_24], %27 {strides = array<i32>} : memref<8x128xf32, #tpu.memory_space<vmem>>, vector<8x128xf32>,
    } else {
    }
    %c0_i32_19 = arith.constant 0 : i32
    %23 = arith.cmpi eq, %arg2, %c0_i32_19 : i32
    %24 = arith.extui %23 : i1 to i32
    %c0_i32_20 = arith.constant 0 : i32
    %25 = arith.cmpi ne, %24, %c0_i32_20 : i32
    scf.if %25 {
      %c0_21 = arith.constant 0 : index
      %c0_22 = arith.constant 0 : index
      %26 = vector.load %arg9[%c0_21, %c0_22] : memref<8x128xf32, #tpu.memory_space<vmem>>, vector<8x128xf32>
      %cst_23 = arith.constant dense<0x7F800000> : vector<8xf32>
      %27 = vector.multi_reduction <minimumf>, %26, %cst_23 [1] : vector<8x128xf32> to vector<8xf32>
      %28 = vector.shape_cast %27 : vector<8xf32> to vector<8x1xf32>
      %29 = vector.shape_cast %28 : vector<8x1xf32> to vector<1x8x1xf32>
      %c0_24 = arith.constant 0 : index
      %c0_25 = arith.constant 0 : index
      %c0_26 = arith.constant 0 : index
      %30 = vector.load %arg7[%c0_24, %c0_25, %c0_26] : memref<1x8x1xf32, #tpu.memory_space<vmem>>, vector<1x8x1xf32>
      tpu.vector_store %arg7[%c0_24, %c0_25, %c0_26], %29 {strides = array<i32>} : memref<1x8x1xf32, #tpu.memory_space<vmem>>, vector<1x8x1xf32>,
    } else {
    }
    return
  }
  func.func @transform_0(%arg0: i32, %arg1: i32, %arg2: i32) -> (i32, i32, i32) {
    %c0_i32 = arith.constant 0 : i32
    %c0_i32_0 = arith.constant 0 : i32
    return %arg0, %arg1, %c0_i32 : i32, i32, i32
  }
  func.func @transform_1(%arg0: i32, %arg1: i32, %arg2: i32) -> (i32, i32, i32) {
    %c0_i32 = arith.constant 0 : i32
    %c0_i32_0 = arith.constant 0 : i32
    return %arg0, %c0_i32, %arg2 : i32, i32, i32
  }
  func.func @transform_2(%arg0: i32, %arg1: i32, %arg2: i32) -> (i32, i32, i32) {
    %c0_i32 = arith.constant 0 : i32
    %c0_i32_0 = arith.constant 0 : i32
    return %arg0, %arg1, %c0_i32 : i32, i32, i32
  }
  func.func @transform_3(%arg0: i32, %arg1: i32, %arg2: i32) -> (i32, i32, i32) {
    %c0_i32 = arith.constant 0 : i32
    %c0_i32_0 = arith.constant 0 : i32
    return %arg0, %c0_i32, %arg2 : i32, i32, i32
  }
  func.func @transform_4(%arg0: i32, %arg1: i32, %arg2: i32) -> (i32, i32, i32) {
    %c0_i32 = arith.constant 0 : i32
    %c0_i32_0 = arith.constant 0 : i32
    return %arg0, %arg1, %c0_i32 : i32, i32, i32
  }
  func.func @transform_5(%arg0: i32, %arg1: i32, %arg2: i32) -> (i32, i32, i32, i32) {
    %c0_i32 = arith.constant 0 : i32
    %c0_i32_0 = arith.constant 0 : i32
    return %arg0, %arg1, %c0_i32, %arg2 : i32, i32, i32, i32
  }
}

</mosaic_0001>

<llo_original>
// kernel: chamfer_distance.1
$region0: #{chamfer_distance.1}
  #allocation0 [shape = 'u32[]', space=smem, size = 0x4, offset = 0x4, fixed_abs, tag = 'smem constant byte address 0x4 - core index']
  #allocation1 [shape = 'u32[144,128]{1,0:T(1,128)}', space=vmem, size = 0x12000, scoped, tag = 'internal scratch']
  #allocation2 [shape = 'f32[8,128]{1,0:T(8,128)}', space=vmem, size = 0x1000, scoped, tag = 'scratch operand']
  %s0 = inlined_call_operand.vmem [shape: f32[2,8,3], index: 0, kind: input, shape index: {}]
  %s1 = inlined_call_operand.vmem [shape: f32[2,3,128], index: 1, kind: input, shape index: {}]
  %s2 = inlined_call_operand.vmem [shape: f32[2,8,1], index: 2, kind: input, shape index: {}]
  %s3 = inlined_call_operand.vmem [shape: f32[2,1,128], index: 3, kind: input, shape index: {}]
  %s4 = inlined_call_operand.vmem [shape: f32[2,8,1], index: 4, kind: output, shape index: {0}]
  %s5 = inlined_call_operand.vmem [shape: f32[2,1,1,128], index: 5, kind: output, shape index: {1}]
  %6 = xla_tuple %s4, %s5
  %s7 = sld [smem:[#allocation0]]
  $region69: #{chamfer_distance.1} parent=0
    _
  %s9 = ssub.s32 1, %s7
  %s10 = scalar_select 0, %s9, %s7
  loop: start=0, step=1, limit=4
  $region2: #{chamfer_distance.1} parent=0 // loop_pre_header
    _
  $region3: #{chamfer_distance.1} parent=0 // loop_header
    %s12 = sphi 0, %s16
    %p13 = scmp.ge.s32.totalorder %s12, 4
    %s19 = sphi 0, %s38
    %s20 = sphi 0, %s34
    %s21 = sphi 0, %s30
    %s22 = sphi 0, %s19
    %s23 = sphi 0, %s20
    %s24 = sphi 0, %s21
    %s25 = sphi 0, %s22
    %s26 = sphi 0, %s23
    %s27 = sphi 0, %s24
    %s43 = sphi 0, %s45
    %s46 = sphi 0, %s43
    %s47 = sphi 0, %s46
    %s63 = sphi 0, %s47
    %s71 = sphi 0, %s73
    %s74 = sphi 0, %s71
    %s75 = sphi 0, %s74
    %s91 = sphi 0, %s75
    %s99 = sphi 0, %s101
    %s102 = sphi 0, %s99
    %s103 = sphi 0, %s102
    %s119 = sphi 0, %s103
    %s127 = sphi 0, %s129
    %s130 = sphi 0, %s127
    %s131 = sphi 0, %s130
    %s147 = sphi 0, %s131
    %s155 = sphi 0, %s157
    %s158 = sphi 0, %s155
    %s159 = sphi 0, %s158
    %s175 = sphi 0, %s159
    %s185 = sphi 0, %s187
    %s188 = sphi 0, %s185
    %s189 = sphi 0, %s188
    %s205 = sphi 0, %s189
  $region4: #{chamfer_distance.1} parent=0 // loop_header_branch
    %15 = sbr.rel (%p13) target = $region8
  $region5: #{chamfer_distance.1} parent=0 // loop_body
    %s17 = ssub.s32 %s12, 1
    %s18 = ssub.s32 %s12, 2
    %s28 = sadd.s32 1, %s21
    %p29 = scmp.ge.s32.totalorder %s28, 1
    %s30 = scalar_select %p29, 0, %s28
    %s31 = sadd.s32 1, %s20
    %s32 = scalar_select %p29, %s31, %s20
    %p33 = scmp.ge.s32.totalorder %s32, 1
    %s34 = scalar_select %p33, 0, %s32
    %s35 = sadd.s32 1, %s19
    %s36 = scalar_select %p33, %s35, %s19
    %p37 = scmp.ge.s32.totalorder %s36, 2
    %s38 = scalar_select %p37, 0, %s36
    %s39 = ssub.s32 %s19, %s38
    %s40 = ssub.s32 %s20, %s34
    %s41 = sor.u32 %s39, %s40
    %p42 = scmp.eq.s32.totalorder %s41, 0
    %s44 = sadd.s32 %s43, 1
    %s45 = scalar_select %p42, %s43, %s44
    %p48 = pneg %p42
    %p49 = scmp.eq.s32.totalorder %s12, 1
    %p50 = por %p48, %p49
    %p51 = scmp.ne.s32.totalorder %s43, %s46
    %p52 = scmp.eq.s32.totalorder %s12, 0
    %p53 = por %p51, %p52
    %p54 = scmp.ne.s32.totalorder %s43, %s46
    %p55 = scmp.eq.s32.totalorder %s17, 1
    %p56 = por %p54, %p55
    %p57 = scmp.ne.s32.totalorder %s46, %s47
    %p58 = scmp.eq.s32.totalorder %s17, 0
    %p59 = por %p57, %p58
    %p60 = scmp.ne.s32.totalorder %s46, %s47
    %p61 = scmp.eq.s32.totalorder %s18, 1
    %p62 = por %p60, %p61
    %p64 = scmp.ne.s32.totalorder %s47, %s63
    %p65 = scmp.eq.s32.totalorder %s18, 0
    %p66 = por %p64, %p65
    %s67 = ssub.s32 %s19, %s38
    %s68 = ssub.s32 %s21, %s30
    %s69 = sor.u32 %s67, %s68
    %p70 = scmp.eq.s32.totalorder %s69, 0
    %s72 = sadd.s32 %s71, 1
    %s73 = scalar_select %p70, %s71, %s72
    %p76 = pneg %p70
    %p77 = scmp.eq.s32.totalorder %s12, 1
    %p78 = por %p76, %p77
    %p79 = scmp.ne.s32.totalorder %s71, %s74
    %p80 = scmp.eq.s32.totalorder %s12, 0
    %p81 = por %p79, %p80
    %p82 = scmp.ne.s32.totalorder %s71, %s74
    %p83 = scmp.eq.s32.totalorder %s17, 1
    %p84 = por %p82, %p83
    %p85 = scmp.ne.s32.totalorder %s74, %s75
    %p86 = scmp.eq.s32.totalorder %s17, 0
    %p87 = por %p85, %p86
    %p88 = scmp.ne.s32.totalorder %s74, %s75
    %p89 = scmp.eq.s32.totalorder %s18, 1
    %p90 = por %p88, %p89
    %p92 = scmp.ne.s32.totalorder %s75, %s91
    %p93 = scmp.eq.s32.totalorder %s18, 0
    %p94 = por %p92, %p93
    %s95 = ssub.s32 %s19, %s38
    %s96 = ssub.s32 %s20, %s34
    %s97 = sor.u32 %s95, %s96
    %p98 = scmp.eq.s32.totalorder %s97, 0
    %s100 = sadd.s32 %s99, 1
    %s101 = scalar_select %p98, %s99, %s100
    %p104 = pneg %p98
    %p105 = scmp.eq.s32.totalorder %s12, 1
    %p106 = por %p104, %p105
    %p107 = scmp.ne.s32.totalorder %s99, %s102
    %p108 = scmp.eq.s32.totalorder %s12, 0
    %p109 = por %p107, %p108
    %p110 = scmp.ne.s32.totalorder %s99, %s102
    %p111 = scmp.eq.s32.totalorder %s17, 1
    %p112 = por %p110, %p111
    %p113 = scmp.ne.s32.totalorder %s102, %s103
    %p114 = scmp.eq.s32.totalorder %s17, 0
    %p115 = por %p113, %p114
    %p116 = scmp.ne.s32.totalorder %s102, %s103
    %p117 = scmp.eq.s32.totalorder %s18, 1
    %p118 = por %p116, %p117
    %p120 = scmp.ne.s32.totalorder %s103, %s119
    %p121 = scmp.eq.s32.totalorder %s18, 0
    %p122 = por %p120, %p121
    %s123 = ssub.s32 %s19, %s38
    %s124 = ssub.s32 %s21, %s30
    %s125 = sor.u32 %s123, %s124
    %p126 = scmp.eq.s32.totalorder %s125, 0
    %s128 = sadd.s32 %s127, 1
    %s129 = scalar_select %p126, %s127, %s128
    %p132 = pneg %p126
    %p133 = scmp.eq.s32.totalorder %s12, 1
    %p134 = por %p132, %p133
    %p135 = scmp.ne.s32.totalorder %s127, %s130
    %p136 = scmp.eq.s32.totalorder %s12, 0
    %p137 = por %p135, %p136
    %p138 = scmp.ne.s32.totalorder %s127, %s130
    %p139 = scmp.eq.s32.totalorder %s17, 1
    %p140 = por %p138, %p139
    %p141 = scmp.ne.s32.totalorder %s130, %s131
    %p142 = scmp.eq.s32.totalorder %s17, 0
    %p143 = por %p141, %p142
    %p144 = scmp.ne.s32.totalorder %s130, %s131
    %p145 = scmp.eq.s32.totalorder %s18, 1
    %p146 = por %p144, %p145
    %p148 = scmp.ne.s32.totalorder %s131, %s147
    %p149 = scmp.eq.s32.totalorder %s18, 0
    %p150 = por %p148, %p149
    %s151 = ssub.s32 %s19, %s38
    %s152 = ssub.s32 %s20, %s34
    %s153 = sor.u32 %s151, %s152
    %p154 = scmp.eq.s32.totalorder %s153, 0
    %s156 = sadd.s32 %s155, 1
    %s157 = scalar_select %p154, %s155, %s156
    %p160 = pneg %p154
    %p161 = scmp.eq.s32.totalorder %s12, 1
    %p162 = por %p160, %p161
    %p163 = scmp.ne.s32.totalorder %s155, %s158
    %p164 = scmp.eq.s32.totalorder %s12, 0
    %p165 = por %p163, %p164
    %p166 = scmp.ne.s32.totalorder %s155, %s158
    %p167 = scmp.eq.s32.totalorder %s17, 1
    %p168 = por %p166, %p167
    %p169 = scmp.ne.s32.totalorder %s158, %s159
    %p170 = scmp.eq.s32.totalorder %s17, 0
    %p171 = por %p169, %p170
    %p172 = scmp.ne.s32.totalorder %s158, %s159
    %p173 = scmp.eq.s32.totalorder %s18, 1
    %p174 = por %p172, %p173
    %p176 = scmp.ne.s32.totalorder %s159, %s175
    %p177 = scmp.eq.s32.totalorder %s18, 0
    %p178 = por %p176, %p177
    %s179 = ssub.s32 %s19, %s38
    %s180 = ssub.s32 %s20, %s34
    %s181 = sor.u32 %s179, %s180
    %s182 = ssub.s32 %s21, %s30
    %s183 = sor.u32 %s181, %s182
    %p184 = scmp.eq.s32.totalorder %s183, 0
    %s186 = sadd.s32 %s185, 1
    %s187 = scalar_select %p184, %s185, %s186
    %p190 = pneg %p184
    %p191 = scmp.eq.s32.totalorder %s12, 1
    %p192 = por %p190, %p191
    %p193 = scmp.ne.s32.totalorder %s185, %s188
    %p194 = scmp.eq.s32.totalorder %s12, 0
    %p195 = por %p193, %p194
    %p196 = scmp.ne.s32.totalorder %s185, %s188
    %p197 = scmp.eq.s32.totalorder %s17, 1
    %p198 = por %p196, %p197
    %p199 = scmp.ne.s32.totalorder %s188, %s189
    %p200 = scmp.eq.s32.totalorder %s17, 0
    %p201 = por %p199, %p200
    %p202 = scmp.ne.s32.totalorder %s188, %s189
    %p203 = scmp.eq.s32.totalorder %s18, 1
    %p204 = por %p202, %p203
    %p206 = scmp.ne.s32.totalorder %s189, %s205
    %p207 = scmp.eq.s32.totalorder %s18, 0
    %p208 = por %p206, %p207
    %p209 = scmp.le.s32.totalorder 1, %s12
    %p210 = scmp.lt.s32.totalorder %s12, 3
    %p211 = pnand %p209, %p210
    %p212 = pneg %p211
    // Predicated region
    $region9: #{chamfer_distance.1} parent=5 // pred_check
      _
    $region10: #{chamfer_distance.1} parent=5 // pred_check_branch
      %214 = sbr.rel (%p211) target = $region12
    $region11: #{chamfer_distance.1} parent=5 // pred_region
      %s215 = ssub.s32 %s12, 1
    $region12: #{chamfer_distance.1} parent=5 // pred_fallthru
      _
    %p216 = scmp.lt.s32.totalorder %s12, 2
    // Predicated region
    $region13: #{chamfer_distance.1} parent=5 // pred_check
      %p217 = pneg %p216
    $region14: #{chamfer_distance.1} parent=5 // pred_check_branch
      %219 = sbr.rel (%p217) target = $region16
    $region15: #{chamfer_distance.1} parent=5 // pred_region
      // Predicated region
      $region17: #{chamfer_distance.1} parent=15 // pred_check
        %p220 = pneg %p53
      $region18: #{chamfer_distance.1} parent=15 // pred_check_branch
        %222 = sbr.rel (%p220) target = $region20
      $region19: #{chamfer_distance.1} parent=15 // pred_region
        %p223 = scmp.lt.s32.totalorder %s19, 1
        %s224 = scalar_select %p223, %s19, 1
        %p225 = scmp.lt.s32.totalorder %s20, 0
        %s226 = scalar_select %p225, %s20, 0
        %s227 = sadd.s32 %s226, %s224
        %s228 = smul.addr %s227, 8
        %s229 = scalar_lea.vmem %s0, %s228
      $region20: #{chamfer_distance.1} parent=15 // pred_fallthru
        _
      // Predicated region
      $region21: #{chamfer_distance.1} parent=15 // pred_check
        %p230 = pneg %p81
      $region22: #{chamfer_distance.1} parent=15 // pred_check_branch
        %232 = sbr.rel (%p230) target = $region24
      $region23: #{chamfer_distance.1} parent=15 // pred_region
        %p233 = scmp.lt.s32.totalorder %s19, 1
        %s234 = scalar_select %p233, %s19, 1
        %p235 = scmp.lt.s32.totalorder %s21, 0
        %s236 = scalar_select %p235, %s21, 0
        %s237 = sadd.s32 %s236, %s234
        %s238 = smul.addr %s237, 4
        %s239 = scalar_lea.vmem %s1, %s238
      $region24: #{chamfer_distance.1} parent=15 // pred_fallthru
        _
      // Predicated region
      $region25: #{chamfer_distance.1} parent=15 // pred_check
        %p240 = pneg %p109
      $region26: #{chamfer_distance.1} parent=15 // pred_check_branch
        %242 = sbr.rel (%p240) target = $region28
      $region27: #{chamfer_distance.1} parent=15 // pred_region
        %p243 = scmp.lt.s32.totalorder %s19, 1
        %s244 = scalar_select %p243, %s19, 1
        %p245 = scmp.lt.s32.totalorder %s20, 0
        %s246 = scalar_select %p245, %s20, 0
        %s247 = sadd.s32 %s246, %s244
        %s248 = smul.addr %s247, 8
        %s249 = scalar_lea.vmem %s2, %s248
      $region28: #{chamfer_distance.1} parent=15 // pred_fallthru
        _
      // Predicated region
      $region29: #{chamfer_distance.1} parent=15 // pred_check
        %p250 = pneg %p137
      $region30: #{chamfer_distance.1} parent=15 // pred_check_branch
        %252 = sbr.rel (%p250) target = $region32
      $region31: #{chamfer_distance.1} parent=15 // pred_region
        %p253 = scmp.lt.s32.totalorder %s19, 1
        %s254 = scalar_select %p253, %s19, 1
        %p255 = scmp.lt.s32.totalorder %s21, 0
        %s256 = scalar_select %p255, %s21, 0
        %s257 = sadd.s32 %s256, %s254
        %s258 = scalar_lea.vmem %s3, %s257
      $region32: #{chamfer_distance.1} parent=15 // pred_fallthru
        _
    $region16: #{chamfer_distance.1} parent=5 // pred_fallthru
      _
    %p259 = scmp.le.s32.totalorder 1, %s12
    %p260 = scmp.lt.s32.totalorder %s12, 3
    %p261 = pnand %p259, %p260
    %p262 = pneg %p261
    // Predicated region
    $region33: #{chamfer_distance.1} parent=5 // pred_check
      _
    $region34: #{chamfer_distance.1} parent=5 // pred_check_branch
      %264 = sbr.rel (%p261) target = $region36
    $region35: #{chamfer_distance.1} parent=5 // pred_region
      %s265 = ssub.s32 %s12, 1
      %p266 = scmp.lt.s32.totalorder %s22, 1
      %s267 = scalar_select %p266, %s22, 1
      %p268 = scmp.lt.s32.totalorder %s23, 0
      %s269 = scalar_select %p268, %s23, 0
      %s270 = sadd.s32 %s269, %s267
      %s271 = smul.addr %s270, 8
      %s272 = scalar_lea.vmem %s0, %s271
      %p273 = pneg %p59
      %p274 = pneg %p56
      %p275 = scmp.lt.s32.totalorder %s22, 1
      %s276 = scalar_select %p275, %s22, 1
      %p277 = scmp.lt.s32.totalorder %s24, 0
      %s278 = scalar_select %p277, %s24, 0
      %s279 = sadd.s32 %s278, %s276
      %s280 = smul.addr %s279, 4
      %s281 = scalar_lea.vmem %s1, %s280
      %p282 = pneg %p87
      %p283 = pneg %p84
      %p284 = scmp.lt.s32.totalorder %s22, 1
      %s285 = scalar_select %p284, %s22, 1
      %p286 = scmp.lt.s32.totalorder %s23, 0
      %s287 = scalar_select %p286, %s23, 0
      %s288 = sadd.s32 %s287, %s285
      %s289 = smul.addr %s288, 8
      %s290 = scalar_lea.vmem %s2, %s289
      %p291 = pneg %p115
      %p292 = pneg %p112
      %p293 = scmp.lt.s32.totalorder %s22, 1
      %s294 = scalar_select %p293, %s22, 1
      %p295 = scmp.lt.s32.totalorder %s24, 0
      %s296 = scalar_select %p295, %s24, 0
      %s297 = sadd.s32 %s296, %s294
      %s298 = scalar_lea.vmem %s3, %s297
      %p299 = pneg %p143
      %p300 = pneg %p140
      %p301 = pneg %p171
      %p302 = pneg %p168
      %p303 = scmp.lt.s32.totalorder %s22, 1
      %s304 = scalar_select %p303, %s22, 1
      %p305 = scmp.lt.s32.totalorder %s23, 0
      %s306 = scalar_select %p305, %s23, 0
      %s307 = sadd.s32 %s306, %s304
      %s308 = smul.addr %s307, 8
      %s309 = scalar_lea.vmem %s4, %s308
      %p310 = pneg %p201
      %p311 = pneg %p198
      %p312 = scmp.lt.s32.totalorder %s22, 1
      %s313 = scalar_select %p312, %s22, 1
      %p314 = scmp.lt.s32.totalorder %s23, 0
      %s315 = scalar_select %p314, %s23, 0
      %p316 = scmp.lt.s32.totalorder %s24, 0
      %s317 = scalar_select %p316, %s24, 0
      %s318 = sadd.s32 %s317, %s315
      %s319 = sadd.s32 %s318, %s313
      %s320 = scalar_lea.vmem %s5, %s319
      %p321 = scmp.lt.s32.totalorder %s22, 1
      %s322 = scalar_select %p321, %s22, 1
      %p323 = scmp.lt.s32.totalorder %s23, 0
      %s324 = scalar_select %p323, %s23, 0
      %s325 = sadd.s32 %s324, %s322
      %s326 = smul.addr %s325, 8
      %s327 = scalar_lea.vmem %s0, %s326
      %p328 = scmp.lt.s32.totalorder %s22, 1
      %s329 = scalar_select %p328, %s22, 1
      %p330 = scmp.lt.s32.totalorder %s24, 0
      %s331 = scalar_select %p330, %s24, 0
      %s332 = sadd.s32 %s331, %s329
      %s333 = smul.addr %s332, 4
      %s334 = scalar_lea.vmem %s1, %s333
      %p335 = scmp.lt.s32.totalorder %s22, 1
      %s336 = scalar_select %p335, %s22, 1
      %p337 = scmp.lt.s32.totalorder %s23, 0
      %s338 = scalar_select %p337, %s23, 0
      %s339 = sadd.s32 %s338, %s336
      %s340 = smul.addr %s339, 8
      %s341 = scalar_lea.vmem %s2, %s340
      %p342 = scmp.lt.s32.totalorder %s22, 1
      %s343 = scalar_select %p342, %s22, 1
      %p344 = scmp.lt.s32.totalorder %s24, 0
      %s345 = scalar_select %p344, %s24, 0
      %s346 = sadd.s32 %s345, %s343
      %s347 = scalar_lea.vmem %s3, %s346
      %p348 = scmp.lt.s32.totalorder %s22, 1
      %s349 = scalar_select %p348, %s22, 1
      %p350 = scmp.lt.s32.totalorder %s23, 0
      %s351 = scalar_select %p350, %s23, 0
      %s352 = sadd.s32 %s351, %s349
      %s353 = smul.addr %s352, 8
      %s354 = scalar_lea.vmem %s4, %s353
      %p355 = scmp.lt.s32.totalorder %s22, 1
      %s356 = scalar_select %p355, %s22, 1
      %p357 = scmp.lt.s32.totalorder %s23, 0
      %s358 = scalar_select %p357, %s23, 0
      %p359 = scmp.lt.s32.totalorder %s24, 0
      %s360 = scalar_select %p359, %s24, 0
      %s361 = sadd.s32 %s360, %s358
      %s362 = sadd.s32 %s361, %s356
      %s363 = scalar_lea.vmem %s5, %s362
      %v364 = vld [vmem:[%s327] sm:$0xff]
      %v365 = vld [vmem:[%s334] sm:$0x7]
      %v366 = vld [vmem:[%s341] sm:$0xff]
      %v367 = vld [vmem:[%s347] sm:$0x1]
      %vm368 = vcmask 23552
      %v370 = vsel %vm368, %v364, 0
      %vm372 = vcmask 1042432
      %v374 = vsel %vm372, %v365, 0
      %376 = vmatprep.subr.mxu0 0.0
      %377 = vmatpush1.msra.mxu0 %v374
      %378 = vmatprep.subr.mxu0 0.0
      %379 = vmatpush1.msra.mxu0 0.0
      %380 = vmatprep.subr.mxu0 0.0
      %381 = vmatpush1.msra.mxu0 0.0
      %382 = vmatprep.subr.mxu0 0.0
      %383 = vmatpush1.msra.mxu0 0.0
      %384 = vmatprep.subr.mxu0 0.0
      %385 = vmatpush1.msra.mxu0 0.0
      %386 = vmatprep.subr.mxu0 0.0
      %387 = vmatpush1.msra.mxu0 0.0
      %388 = vmatprep.subr.mxu0 0.0
      %389 = vmatpush1.msra.mxu0 0.0
      %390 = vmatprep.subr.mxu0 0.0
      %391 = vmatpush1.msra.mxu0 0.0
      %392 = vmatprep.subr.mxu0 0.0
      %393 = vmatpush1.msra.mxu0 0.0
      %394 = vmatprep.subr.mxu0 0.0
      %395 = vmatpush1.msra.mxu0 0.0
      %396 = vmatprep.subr.mxu0 0.0
      %397 = vmatpush1.msra.mxu0 0.0
      %398 = vmatprep.subr.mxu0 0.0
      %399 = vmatpush1.msra.mxu0 0.0
      %400 = vmatprep.subr.mxu0 0.0
      %401 = vmatpush1.msra.mxu0 0.0
      %402 = vmatprep.subr.mxu0 0.0
      %403 = vmatpush1.msra.mxu0 0.0
      %404 = vmatprep.subr.mxu0 0.0
      %405 = vmatpush1.msra.mxu0 0.0
      %406 = vmatprep.subr.mxu0 0.0
      %407 = vmatpush1.msra.mxu0 0.0
      %408 = vmatprep.subr.mxu0 0.0
      %409 = vmatpush1.msra.mxu0 0.0
      %410 = vmatprep.subr.mxu0 0.0
      %411 = vmatpush1.msra.mxu0 0.0
      %412 = vmatprep.subr.mxu0 0.0
      %413 = vmatpush1.msra.mxu0 0.0
      %414 = vmatprep.subr.mxu0 0.0
      %415 = vmatpush1.msra.mxu0 0.0
      %416 = vmatprep.subr.mxu0 0.0
      %417 = vmatpush1.msra.mxu0 0.0
      %418 = vmatprep.subr.mxu0 0.0
      %419 = vmatpush1.msra.mxu0 0.0
      %420 = vmatprep.subr.mxu0 0.0
      %421 = vmatpush1.msra.mxu0 0.0
      %422 = vmatprep.subr.mxu0 0.0
      %423 = vmatpush1.msra.mxu0 0.0
      %424 = vmatprep.subr.mxu0 0.0
      %425 = vmatpush1.msra.mxu0 0.0
      %426 = vmatprep.subr.mxu0 0.0
      %427 = vmatpush1.msra.mxu0 0.0
      %428 = vmatprep.subr.mxu0 0.0
      %429 = vmatpush1.msra.mxu0 0.0
      %430 = vmatprep.subr.mxu0 0.0
      %431 = vmatpush1.msra.mxu0 0.0
      %432 = vmatprep.subr.mxu0 0.0
      %433 = vmatpush1.msra.mxu0 0.0
      %434 = vmatprep.subr.mxu0 0.0
      %435 = vmatpush1.msra.mxu0 0.0
      %436 = vmatprep.subr.mxu0 0.0
      %437 = vmatpush1.msra.mxu0 0.0
      %438 = vmatprep.subr.mxu0 0.0
      %439 = vmatpush1.msra.mxu0 0.0
      %440 = vmatprep.mubr.f32.mxu0 0.0
      %441 = vmatmul.mubr.f32.gmra.mrb[0].mxu0 %v370
      %v442 = vpop.f32.mrb[0].mxu0
      %v443 = vadd.f32 0.0, %v442
      %v444 = vpop.f32.mrb[0].mxu0
      %445 = vdwg.mxu0
      %v447 = vlaneseq
      %v448 = vshrl.u32 %v447, 7
      %v449 = vsub.s32 0, %v448
      %v450 = vrot.slane %v367, %v449
      %v452 = vsub.f32 %v450, %v443
      %454 = vset.pattern.permute.xlu0 0
      %455 = vperm.xlu0 %454, %v366
      %v456 = vpop.permute.xlu0 %455
      %v458 = vadd.f32 %v456, %v452
      %v459 = vrot.slane %v458, 4
      %v460 = vmin.f32 %v458, %v459
      %v461 = vrot.slane %v460, 2
      %v462 = vmin.f32 %v460, %v461
      %v463 = vrot.slane %v462, 1
      %v464 = vmin.f32 %v462, %v463
      %465 = vst [vmem:[%s363] sm:$0x1] %v464
      %p466 = scmp.eq.s32.totalorder %s24, 0
      // Predicated region
      $region37: #{chamfer_distance.1} parent=35 // pred_check
        %p467 = pneg %p466
      $region38: #{chamfer_distance.1} parent=35 // pred_check_branch
        %469 = sbr.rel (%p467) target = $region40
      $region39: #{chamfer_distance.1} parent=35 // pred_region
        %470 = vst [vmem:[#allocation2] sm:$0xff] %v458
      $region40: #{chamfer_distance.1} parent=35 // pred_fallthru
        _
      %p471 = scmp.gt.s32.totalorder %s24, 0
      // Predicated region
      $region41: #{chamfer_distance.1} parent=35 // pred_check
        %p472 = pneg %p471
      $region42: #{chamfer_distance.1} parent=35 // pred_check_branch
        %474 = sbr.rel (%p472) target = $region44
      $region43: #{chamfer_distance.1} parent=35 // pred_region
        %v475 = vld [vmem:[#allocation2] sm:$0xff]
        %v476 = vmin.f32 %v475, %v458
        %477 = vst [vmem:[#allocation2] sm:$0xff] %v476
      $region44: #{chamfer_distance.1} parent=35 // pred_fallthru
        _
      // Predicated region
      $region45: #{chamfer_distance.1} parent=35 // pred_check
        %p478 = pneg %p466
      $region46: #{chamfer_distance.1} parent=35 // pred_check_branch
        %480 = sbr.rel (%p478) target = $region48
      $region47: #{chamfer_distance.1} parent=35 // pred_region
        %v481 = vld [vmem:[#allocation2] sm:$0xff]
        %482 = vmin.xlane.f32.xlu0 %v481
        %v483 = vpop.xlane.xlu0 %482
        %vm484 = vcmask 7168
        %485 = vst.msk [vmem:[%s354] sm:$0xff] %vm484, %v483
      $region48: #{chamfer_distance.1} parent=35 // pred_fallthru
        _
      %p486 = scmp.lt.s32.totalorder %s22, 1
      %s487 = scalar_select %p486, %s22, 1
      %p488 = scmp.lt.s32.totalorder %s23, 0
      %s489 = scalar_select %p488, %s23, 0
      %s490 = sadd.s32 %s489, %s487
      %s491 = smul.addr %s490, 8
      %s492 = scalar_lea.vmem %s4, %s491
      %p493 = scmp.lt.s32.totalorder %s22, 1
      %s494 = scalar_select %p493, %s22, 1
      %p495 = scmp.lt.s32.totalorder %s23, 0
      %s496 = scalar_select %p495, %s23, 0
      %p497 = scmp.lt.s32.totalorder %s24, 0
      %s498 = scalar_select %p497, %s24, 0
      %s499 = sadd.s32 %s498, %s496
      %s500 = sadd.s32 %s499, %s494
      %s501 = scalar_lea.vmem %s5, %s500
      // Predicated region
      $region49: #{chamfer_distance.1} parent=35 // pred_check
        %p502 = pneg %p168
      $region50: #{chamfer_distance.1} parent=35 // pred_check_branch
        %504 = sbr.rel (%p502) target = $region52
      $region51: #{chamfer_distance.1} parent=35 // pred_region
        _
      $region52: #{chamfer_distance.1} parent=35 // pred_fallthru
        _
      // Predicated region
      $region53: #{chamfer_distance.1} parent=35 // pred_check
        %p505 = pneg %p198
      $region54: #{chamfer_distance.1} parent=35 // pred_check_branch
        %507 = sbr.rel (%p505) target = $region56
      $region55: #{chamfer_distance.1} parent=35 // pred_region
        _
      $region56: #{chamfer_distance.1} parent=35 // pred_fallthru
        _
    $region36: #{chamfer_distance.1} parent=5 // pred_fallthru
      _
    %p508 = scmp.le.s32.totalorder 2, %s12
    // Predicated region
    $region57: #{chamfer_distance.1} parent=5 // pred_check
      %p509 = pneg %p508
    $region58: #{chamfer_distance.1} parent=5 // pred_check_branch
      %511 = sbr.rel (%p509) target = $region60
    $region59: #{chamfer_distance.1} parent=5 // pred_region
      %s512 = ssub.s32 %s12, 2
      // Predicated region
      $region61: #{chamfer_distance.1} parent=59 // pred_check
        %p513 = pneg %p174
      $region62: #{chamfer_distance.1} parent=59 // pred_check_branch
        %515 = sbr.rel (%p513) target = $region64
      $region63: #{chamfer_distance.1} parent=59 // pred_region
        %p516 = scmp.lt.s32.totalorder %s25, 1
        %s517 = scalar_select %p516, %s25, 1
        %p518 = scmp.lt.s32.totalorder %s26, 0
        %s519 = scalar_select %p518, %s26, 0
        %s520 = sadd.s32 %s519, %s517
        %s521 = smul.addr %s520, 8
        %s522 = scalar_lea.vmem %s4, %s521
      $region64: #{chamfer_distance.1} parent=59 // pred_fallthru
        _
      // Predicated region
      $region65: #{chamfer_distance.1} parent=59 // pred_check
        %p523 = pneg %p204
      $region66: #{chamfer_distance.1} parent=59 // pred_check_branch
        %525 = sbr.rel (%p523) target = $region68
      $region67: #{chamfer_distance.1} parent=59 // pred_region
        %p526 = scmp.lt.s32.totalorder %s25, 1
        %s527 = scalar_select %p526, %s25, 1
        %p528 = scmp.lt.s32.totalorder %s26, 0
        %s529 = scalar_select %p528, %s26, 0
        %p530 = scmp.lt.s32.totalorder %s27, 0
        %s531 = scalar_select %p530, %s27, 0
        %s532 = sadd.s32 %s531, %s529
        %s533 = sadd.s32 %s532, %s527
        %s534 = scalar_lea.vmem %s5, %s533
      $region68: #{chamfer_distance.1} parent=59 // pred_fallthru
        _
    $region60: #{chamfer_distance.1} parent=5 // pred_fallthru
      _
  $region6: #{chamfer_distance.1} parent=0 // loop_footer
    %s16 = sadd.s32 1, %s12
  $region7: #{chamfer_distance.1} parent=0 // loop_footer_branch
    %11 = sbr.rel target = $region3
  $region8: #{chamfer_distance.1} parent=0 // loop_exit
    _

</llo_original>
